<compile_context>
chip_gen: v7x
topology: tpu7x:2x2x1
jax: 0.10.0
libtpu: 0.0.40
codegen_flags: <defaults>
</compile_context>

<pallas_src>
import functools

import jax
import jax.numpy as jnp
from jax.experimental import pallas as pl
from jax.experimental.pallas import tpu as pltpu

BN_EPS = 1e-5


# --------------------------------------------------------------------------
# Generation-aware VMEM budgeting.
# --------------------------------------------------------------------------
def _tpu_vmem_budget():
    """Returns (per-input-block byte budget, vmem_limit_bytes-or-None).

    v7x has 64 MiB physical VMEM per TensorCore (32 MiB scoped default), so the
    double-buffered input block must stay well under that; v5e/v6e have 128 MiB
    physical so we raise the scoped limit and use bigger blocks."""
    try:
        cap = pltpu.get_tpu_info().vmem_capacity_bytes
    except Exception:
        # Unknown chip: stay under every generation's default scoped limit.
        return 6 << 20, None
    if cap <= (64 << 20):                 # v7x
        return 6 << 20, 32 << 20
    return 16 << 20, 64 << 20             # v5e / v6e


def _pick_chunk(hw, channels, itemsize, block_budget, max_lane_groups=None):
    """Largest multiple-of-128 spatial chunk whose (channels x chunk) block fits
    the byte budget.  No divisibility requirement: ragged tails are handled by
    the in-kernel mask (phase 1) / Pallas partial-block stores (phase 3)."""
    hw128 = pl.cdiv(hw, 128)                               # spatial extent in 128-lane units
    bytes_per_lane_group = max(1, channels * itemsize * 128)
    k = max(1, block_budget // bytes_per_lane_group)
    if max_lane_groups is not None:
        k = min(k, max_lane_groups)
    k = min(k, hw128)
    return int(k) * 128


# --------------------------------------------------------------------------
# Phase 1: global spatial sum (AdaptiveAvgPool2d(1) numerator).
# --------------------------------------------------------------------------
def _pool_sum_kernel(x_ref, sum_ref, *, hw, chunk, n_outer, n_inner):
    # x_ref:   (1, Cin, chunk)      one (batch, spatial-chunk) tile per grid step
    # sum_ref: (1, 1, 1, Cin)       resident accumulator across the inner axis
    o = pl.program_id(1)
    i = pl.program_id(2)

    @pl.when(i == 0)
    def _init():
        sum_ref[...] = jnp.zeros_like(sum_ref)

    x = x_ref[...].astype(jnp.float32)                       # (1, Cin, chunk)

    # Mask tail lanes / padded grid steps only when the grid's coverage exceeds
    # HW (static decision -> zero cost in the fully-divisible case).
    if n_outer * n_inner * chunk > hw:
        j = o * n_inner + i                                   # global chunk index
        lane = jax.lax.broadcasted_iota(jnp.int32, x.shape, dimension=2)
        valid = (j * chunk + lane) < hw
        x = jnp.where(valid, x, 0.0)

    partial = jnp.sum(x, axis=-1)                             # (1, Cin)  XLU reduce
    sum_ref[...] += partial[:, None, None, :]                 # (1, 1, 1, Cin)


# --------------------------------------------------------------------------
# Phase 3: broadcast the per-(n, c_out) value over all spatial positions
# (== bilinear upsample of a 1x1 map).  The source is already lane-dense
# (128 identical lanes, output dtype), so this is pure vreg replication into
# large unmasked lane-dense stores.
# --------------------------------------------------------------------------
def _broadcast_kernel(y_ref, o_ref):
    # y_ref: (1, Cout, 128)   o_ref: (1, Cout, chunk)  (chunk % 128 == 0)
    reps = o_ref.shape[-1] // 128
    o_ref[...] = jnp.tile(y_ref[...], (1, 1, reps))


# --------------------------------------------------------------------------
# Forward pass (single jit: no dispatch gaps between phases).
# --------------------------------------------------------------------------
@jax.jit
def aspp_pooling_forward(x_nchw, conv_w, gamma, beta, run_mean, run_var):
    """x_nchw: (N, Cin, H, W); conv_w: (Cout, Cin, 1, 1) PyTorch layout."""
    N, Cin, H, W = x_nchw.shape
    Cout = conv_w.shape[0]
    HW = H * W
    itemsize = jnp.dtype(x_nchw.dtype).itemsize

    block_budget, vmem_limit = _tpu_vmem_budget()

    # ---- phase 1: spatial-sum reduction kernel -------------------------------
    chunk1 = _pick_chunk(HW, Cin, itemsize, block_budget)
    n_chunks1 = pl.cdiv(HW, chunk1)
    n_outer = min(2, n_chunks1)          # lets v7x's 2 TCs split the HBM read
    n_inner = pl.cdiv(n_chunks1, n_outer)

    x_flat = x_nchw.reshape(N, Cin, HW)

    def _x_index_map(n, o, i):
        # Padded grid steps (o*n_inner+i >= n_chunks1) re-read the last real
        # block; the in-kernel mask zeroes their contribution.
        return (n, 0, jnp.minimum(o * n_inner + i, n_chunks1 - 1))

    pooled_sum = pl.pallas_call(
        functools.partial(_pool_sum_kernel, hw=HW, chunk=chunk1,
                          n_outer=n_outer, n_inner=n_inner),
        out_shape=jax.ShapeDtypeStruct((N, n_outer, 1, Cin), jnp.float32),
        grid_spec=pltpu.PrefetchScalarGridSpec(
            num_scalar_prefetch=0,
            grid=(N, n_outer, n_inner),
            in_specs=[pl.BlockSpec((1, Cin, chunk1), _x_index_map)],
            out_specs=pl.BlockSpec((1, 1, 1, Cin), lambda n, o, i: (n, o, 0, 0)),
        ),
        compiler_params=pltpu.CompilerParams(
            dimension_semantics=("parallel", "parallel", "arbitrary"),
            vmem_limit_bytes=vmem_limit),
    )(x_flat)

    # ---- phase 2: tiny per-image math in plain XLA ---------------------------
    # Fold BatchNorm (eval mode) into the 1x1 conv:  w' = w * s,  b' = beta - mean * s
    scale = gamma * jax.lax.rsqrt(run_var + BN_EPS)                  # (Cout,)
    w_folded = conv_w.reshape(Cout, Cin).T * scale[None, :]          # (Cin, Cout)
    b_folded = beta - run_mean * scale                               # (Cout,)

    pooled = pooled_sum.reshape(N, n_outer, Cin).sum(axis=1) * (1.0 / HW)   # mean
    y = jnp.maximum(pooled @ w_folded + b_folded, 0.0)               # conv+bn+relu
    y = y.astype(x_nchw.dtype)                                       # cast BEFORE broadcast
    y_lane = jnp.broadcast_to(y[:, :, None], (N, Cout, 128))         # lane-dense source

    # ---- phase 3: broadcast writeback kernel ---------------------------------
    # Cap lane groups at 32 (4096 lanes) — well past the HBM-roofline knee while
    # keeping the in-kernel replication modest.
    chunk3 = _pick_chunk(HW, Cout, itemsize, block_budget, max_lane_groups=32)
    n_chunks3 = pl.cdiv(HW, chunk3)

    out_flat = pl.pallas_call(
        _broadcast_kernel,
        out_shape=jax.ShapeDtypeStruct((N, Cout, HW), x_nchw.dtype),
        grid_spec=pltpu.PrefetchScalarGridSpec(
            num_scalar_prefetch=0,
            grid=(N, n_chunks3),
            in_specs=[pl.BlockSpec((1, Cout, 128), lambda n, j: (n, 0, 0))],
            out_specs=pl.BlockSpec((1, Cout, chunk3), lambda n, j: (n, 0, j)),
        ),
        compiler_params=pltpu.CompilerParams(
            dimension_semantics=("parallel", "parallel"),
            vmem_limit_bytes=vmem_limit),
    )(y_lane)

    return out_flat.reshape(N, Cout, H, W)


# --------------------------------------------------------------------------
# Pure-JAX reference of the same forward pass.
# --------------------------------------------------------------------------
def _reference(x_nchw, conv_w, gamma, beta, run_mean, run_var):
    N, Cin, H, W = x_nchw.shape
    Cout = conv_w.shape[0]
    pooled = jnp.mean(x_nchw.astype(jnp.float32), axis=(2, 3))       # (N, Cin)
    y = pooled @ conv_w.reshape(Cout, Cin).T                         # (N, Cout)
    y = (y - run_mean) / jnp.sqrt(run_var + BN_EPS) * gamma + beta
    y = jnp.maximum(y, 0.0)
    return jnp.broadcast_to(y[:, :, None, None], (N, Cout, H, W)).astype(
        x_nchw.dtype)


if __name__ == "__main__":
    key = jax.random.PRNGKey(0)
    k_x, k_w, k_g, k_b, k_m, k_v = jax.random.split(key, 6)

    N, Cin, Cout, H, W = 2, 4, 8, 16, 16

    x = jax.random.normal(k_x, (N, Cin, H, W), dtype=jnp.float32)
    conv_w = jax.random.normal(k_w, (Cout, Cin, 1, 1), dtype=jnp.float32) * 0.1
    gamma = 1.0 + 0.1 * jax.random.normal(k_g, (Cout,), dtype=jnp.float32)
    beta = 0.1 * jax.random.normal(k_b, (Cout,), dtype=jnp.float32)
    run_mean = 0.05 * jax.random.normal(k_m, (Cout,), dtype=jnp.float32)
    run_var = jnp.abs(1.0 + 0.1 * jax.random.normal(k_v, (Cout,),
                                                    dtype=jnp.float32))

    out = aspp_pooling_forward(x, conv_w, gamma, beta, run_mean, run_var)
    out = jax.block_until_ready(out)

    ref = _reference(x, conv_w, gamma, beta, run_mean, run_var)
    assert out.shape == (N, Cout, H, W)
    assert jnp.allclose(out, ref, atol=1e-5, rtol=1e-5), "mismatch vs reference"

    print("KERNEL_OK")
</pallas_src>

<mosaic_0001>
module attributes {stable_mosaic.version = 11 : i64} {
  func.func @_pool_sum_kernel(%arg0: i32, %arg1: i32, %arg2: i32, %arg3: memref<1x4x256xf32, #tpu.memory_space<vmem>>, %arg4: memref<1x1x1x4xf32, #tpu.memory_space<vmem>>) attributes {dimension_semantics = [#tpu.dimension_semantics<parallel>, #tpu.dimension_semantics<parallel>, #tpu.dimension_semantics<arbitrary>], iteration_bounds = array<i64: 2, 1, 1>, scalar_prefetch = 0 : i64, scratch_operands = 0 : i64, tpu.core_type = #tpu.core_type<tc>, window_params = [{transform_indices = @transform_0, window_bounds = array<i64: 1, 4, 256>}, {transform_indices = @transform_1, window_bounds = array<i64: 1, 1, 1, 4>}]} {
    %c0_i32 = arith.constant 0 : i32
    %0 = arith.cmpi eq, %arg2, %c0_i32 : i32
    %1 = arith.extui %0 : i1 to i32
    %c0_i32_0 = arith.constant 0 : i32
    %2 = arith.cmpi ne, %1, %c0_i32_0 : i32
    scf.if %2 {
      %cst_11 = arith.constant 0.000000e+00 : f32
      %9 = vector.broadcast %cst_11 : f32 to vector<1x1x1x4xf32>
      %c0_12 = arith.constant 0 : index
      %c0_13 = arith.constant 0 : index
      %c0_14 = arith.constant 0 : index
      %c0_15 = arith.constant 0 : index
      %10 = vector.load %arg4[%c0_12, %c0_13, %c0_14, %c0_15] : memref<1x1x1x4xf32, #tpu.memory_space<vmem>>, vector<1x1x1x4xf32>
      tpu.vector_store %arg4[%c0_12, %c0_13, %c0_14, %c0_15], %9 {strides = array<i32>} : memref<1x1x1x4xf32, #tpu.memory_space<vmem>>, vector<1x1x1x4xf32>,
    } else {
    }
    %c0 = arith.constant 0 : index
    %c0_1 = arith.constant 0 : index
    %c0_2 = arith.constant 0 : index
    %3 = vector.load %arg3[%c0, %c0_1, %c0_2] : memref<1x4x256xf32, #tpu.memory_space<vmem>>, vector<1x4x256xf32>
    %cst = arith.constant dense<0.000000e+00> : vector<1x4xf32>
    %4 = vector.multi_reduction <add>, %3, %cst [2] : vector<1x4x256xf32> to vector<1x4xf32>
    %c0_3 = arith.constant 0 : index
    %c0_4 = arith.constant 0 : index
    %c0_5 = arith.constant 0 : index
    %c0_6 = arith.constant 0 : index
    %5 = vector.load %arg4[%c0_3, %c0_4, %c0_5, %c0_6] : memref<1x1x1x4xf32, #tpu.memory_space<vmem>>, vector<1x1x1x4xf32>
    %6 = vector.shape_cast %4 : vector<1x4xf32> to vector<1x1x1x4xf32>
    %7 = arith.addf %5, %6 : vector<1x1x1x4xf32>
    %c0_7 = arith.constant 0 : index
    %c0_8 = arith.constant 0 : index
    %c0_9 = arith.constant 0 : index
    %c0_10 = arith.constant 0 : index
    %8 = vector.load %arg4[%c0_7, %c0_8, %c0_9, %c0_10] : memref<1x1x1x4xf32, #tpu.memory_space<vmem>>, vector<1x1x1x4xf32>
    tpu.vector_store %arg4[%c0_7, %c0_8, %c0_9, %c0_10], %7 {strides = array<i32>} : memref<1x1x1x4xf32, #tpu.memory_space<vmem>>, vector<1x1x1x4xf32>,
    return
  }
  func.func @transform_0(%arg0: i32, %arg1: i32, %arg2: i32) -> (i32, i32, i32) {
    %c1_i32 = arith.constant 1 : i32
    %0 = arith.muli %arg1, %c1_i32 : i32
    %1 = arith.addi %0, %arg2 : i32
    %c0_i32 = arith.constant 0 : i32
    %2 = arith.minsi %1, %c0_i32 : i32
    %c0_i32_0 = arith.constant 0 : i32
    %c0_i32_1 = arith.constant 0 : i32
    return %arg0, %c0_i32_0, %2 : i32, i32, i32
  }
  func.func @transform_1(%arg0: i32, %arg1: i32, %arg2: i32) -> (i32, i32, i32, i32) {
    %c0_i32 = arith.constant 0 : i32
    %c0_i32_0 = arith.constant 0 : i32
    %c0_i32_1 = arith.constant 0 : i32
    return %arg0, %arg1, %c0_i32, %c0_i32_0 : i32, i32, i32, i32
  }
}

module attributes {stable_mosaic.version = 11 : i64} {
  func.func @_broadcast_kernel(%arg0: i32, %arg1: i32, %arg2: memref<1x8x128xf32, #tpu.memory_space<vmem>>, %arg3: memref<1x8x256xf32, #tpu.memory_space<vmem>>) attributes {dimension_semantics = [#tpu.dimension_semantics<parallel>, #tpu.dimension_semantics<parallel>], iteration_bounds = array<i64: 2, 1>, scalar_prefetch = 0 : i64, scratch_operands = 0 : i64, tpu.core_type = #tpu.core_type<tc>, window_params = [{transform_indices = @transform_0, window_bounds = array<i64: 1, 8, 128>}, {transform_indices = @transform_1, window_bounds = array<i64: 1, 8, 256>}]} {
    %c0 = arith.constant 0 : index
    %c0_0 = arith.constant 0 : index
    %c0_1 = arith.constant 0 : index
    %0 = vector.load %arg2[%c0, %c0_0, %c0_1] : memref<1x8x128xf32, #tpu.memory_space<vmem>>, vector<1x8x128xf32>
    %1 = tpu.concatenate %0, %0 in 2 : vector<1x8x128xf32>, vector<1x8x128xf32> -> vector<1x8x256xf32>
    %c0_2 = arith.constant 0 : index
    %c0_3 = arith.constant 0 : index
    %c0_4 = arith.constant 0 : index
    %2 = vector.load %arg3[%c0_2, %c0_3, %c0_4] : memref<1x8x256xf32, #tpu.memory_space<vmem>>, vector<1x8x256xf32>
    tpu.vector_store %arg3[%c0_2, %c0_3, %c0_4], %1 {strides = array<i32>} : memref<1x8x256xf32, #tpu.memory_space<vmem>>, vector<1x8x256xf32>,
    return
  }
  func.func @transform_0(%arg0: i32, %arg1: i32) -> (i32, i32, i32) {
    %c0_i32 = arith.constant 0 : i32
    %c0_i32_0 = arith.constant 0 : i32
    %c0_i32_1 = arith.constant 0 : i32
    return %arg0, %c0_i32, %c0_i32_0 : i32, i32, i32
  }
  func.func @transform_1(%arg0: i32, %arg1: i32) -> (i32, i32, i32) {
    %c0_i32 = arith.constant 0 : i32
    %c0_i32_0 = arith.constant 0 : i32
    return %arg0, %c0_i32, %arg1 : i32, i32, i32
  }
}

</mosaic_0001>

<llo_original>
// kernel: aspp_pooling_forward.3
$region0: #{aspp_pooling_forward.3}
  #allocation0 [shape = 'u32[]', space=smem, size = 0x4, offset = 0x4, fixed_abs, tag = 'smem constant byte address 0x4 - core index']
  #allocation1 [shape = 'u32[144,128]{1,0:T(1,128)}', space=vmem, size = 0x12000, scoped, tag = 'internal scratch']
  %s0 = inlined_call_operand.vmem [shape: f32[2,8,128], index: 0, kind: input, shape index: {}]
  %s1 = inlined_call_operand.vmem [shape: f32[2,8,256], index: 1, kind: output, shape index: {}]
  %s2 = sld [smem:[#allocation0]]
  $region37: #{aspp_pooling_forward.3} parent=0
    _
  %s4 = ssub.s32 1, %s2
  %s5 = scalar_select 0, %s4, %s2
  loop: start=0, step=1, limit=4
  $region2: #{aspp_pooling_forward.3} parent=0 // loop_pre_header
    _
  $region3: #{aspp_pooling_forward.3} parent=0 // loop_header
    %s7 = sphi 0, %s11
    %p8 = scmp.ge.s32.totalorder %s7, 4
    %s14 = sphi 0, %s26
    %s15 = sphi 0, %s22
    %s16 = sphi 0, %s14
    %s17 = sphi 0, %s15
    %s18 = sphi 0, %s16
    %s19 = sphi 0, %s17
    %s29 = sphi 0, %s31
    %s32 = sphi 0, %s29
    %s33 = sphi 0, %s32
    %s49 = sphi 0, %s33
    %s57 = sphi 0, %s59
    %s60 = sphi 0, %s57
    %s61 = sphi 0, %s60
    %s77 = sphi 0, %s61
  $region4: #{aspp_pooling_forward.3} parent=0 // loop_header_branch
    %10 = sbr.rel (%p8) target = $region8
  $region5: #{aspp_pooling_forward.3} parent=0 // loop_body
    %s12 = ssub.s32 %s7, 1
    %s13 = ssub.s32 %s7, 2
    %s20 = sadd.s32 1, %s15
    %p21 = scmp.ge.s32.totalorder %s20, 1
    %s22 = scalar_select %p21, 0, %s20
    %s23 = sadd.s32 1, %s14
    %s24 = scalar_select %p21, %s23, %s14
    %p25 = scmp.ge.s32.totalorder %s24, 2
    %s26 = scalar_select %p25, 0, %s24
    %s27 = ssub.s32 %s14, %s26
    %p28 = scmp.eq.s32.totalorder %s27, 0
    %s30 = sadd.s32 %s29, 1
    %s31 = scalar_select %p28, %s29, %s30
    %p34 = pneg %p28
    %p35 = scmp.eq.s32.totalorder %s7, 1
    %p36 = por %p34, %p35
    %p37 = scmp.ne.s32.totalorder %s29, %s32
    %p38 = scmp.eq.s32.totalorder %s7, 0
    %p39 = por %p37, %p38
    %p40 = scmp.ne.s32.totalorder %s29, %s32
    %p41 = scmp.eq.s32.totalorder %s12, 1
    %p42 = por %p40, %p41
    %p43 = scmp.ne.s32.totalorder %s32, %s33
    %p44 = scmp.eq.s32.totalorder %s12, 0
    %p45 = por %p43, %p44
    %p46 = scmp.ne.s32.totalorder %s32, %s33
    %p47 = scmp.eq.s32.totalorder %s13, 1
    %p48 = por %p46, %p47
    %p50 = scmp.ne.s32.totalorder %s33, %s49
    %p51 = scmp.eq.s32.totalorder %s13, 0
    %p52 = por %p50, %p51
    %s53 = ssub.s32 %s14, %s26
    %s54 = ssub.s32 %s15, %s22
    %s55 = sor.u32 %s53, %s54
    %p56 = scmp.eq.s32.totalorder %s55, 0
    %s58 = sadd.s32 %s57, 1
    %s59 = scalar_select %p56, %s57, %s58
    %p62 = pneg %p56
    %p63 = scmp.eq.s32.totalorder %s7, 1
    %p64 = por %p62, %p63
    %p65 = scmp.ne.s32.totalorder %s57, %s60
    %p66 = scmp.eq.s32.totalorder %s7, 0
    %p67 = por %p65, %p66
    %p68 = scmp.ne.s32.totalorder %s57, %s60
    %p69 = scmp.eq.s32.totalorder %s12, 1
    %p70 = por %p68, %p69
    %p71 = scmp.ne.s32.totalorder %s60, %s61
    %p72 = scmp.eq.s32.totalorder %s12, 0
    %p73 = por %p71, %p72
    %p74 = scmp.ne.s32.totalorder %s60, %s61
    %p75 = scmp.eq.s32.totalorder %s13, 1
    %p76 = por %p74, %p75
    %p78 = scmp.ne.s32.totalorder %s61, %s77
    %p79 = scmp.eq.s32.totalorder %s13, 0
    %p80 = por %p78, %p79
    %p81 = scmp.le.s32.totalorder 1, %s7
    %p82 = scmp.lt.s32.totalorder %s7, 3
    %p83 = pnand %p81, %p82
    %p84 = pneg %p83
    // Predicated region
    $region9: #{aspp_pooling_forward.3} parent=5 // pred_check
      _
    $region10: #{aspp_pooling_forward.3} parent=5 // pred_check_branch
      %86 = sbr.rel (%p83) target = $region12
    $region11: #{aspp_pooling_forward.3} parent=5 // pred_region
      %s87 = ssub.s32 %s7, 1
    $region12: #{aspp_pooling_forward.3} parent=5 // pred_fallthru
      _
    %p88 = scmp.lt.s32.totalorder %s7, 2
    // Predicated region
    $region13: #{aspp_pooling_forward.3} parent=5 // pred_check
      %p89 = pneg %p88
    $region14: #{aspp_pooling_forward.3} parent=5 // pred_check_branch
      %91 = sbr.rel (%p89) target = $region16
    $region15: #{aspp_pooling_forward.3} parent=5 // pred_region
      // Predicated region
      $region17: #{aspp_pooling_forward.3} parent=15 // pred_check
        %p92 = pneg %p39
      $region18: #{aspp_pooling_forward.3} parent=15 // pred_check_branch
        %94 = sbr.rel (%p92) target = $region20
      $region19: #{aspp_pooling_forward.3} parent=15 // pred_region
        %p95 = scmp.lt.s32.totalorder %s14, 1
        %s96 = scalar_select %p95, %s14, 1
        %s97 = smul.addr %s96, 8
        %s98 = scalar_lea.vmem %s0, %s97
      $region20: #{aspp_pooling_forward.3} parent=15 // pred_fallthru
        _
    $region16: #{aspp_pooling_forward.3} parent=5 // pred_fallthru
      _
    %p99 = scmp.le.s32.totalorder 1, %s7
    %p100 = scmp.lt.s32.totalorder %s7, 3
    %p101 = pnand %p99, %p100
    %p102 = pneg %p101
    // Predicated region
    $region21: #{aspp_pooling_forward.3} parent=5 // pred_check
      _
    $region22: #{aspp_pooling_forward.3} parent=5 // pred_check_branch
      %104 = sbr.rel (%p101) target = $region24
    $region23: #{aspp_pooling_forward.3} parent=5 // pred_region
      %s105 = ssub.s32 %s7, 1
      %p106 = scmp.lt.s32.totalorder %s16, 1
      %s107 = scalar_select %p106, %s16, 1
      %s108 = smul.addr %s107, 8
      %s109 = scalar_lea.vmem %s0, %s108
      %p110 = pneg %p45
      %p111 = pneg %p42
      %p112 = pneg %p73
      %p113 = pneg %p70
      %s114 = smul.u32 2, %s17
      %p115 = scmp.lt.s32.totalorder %s16, 1
      %s116 = scalar_select %p115, %s16, 1
      %p117 = scmp.lt.s32.totalorder %s114, 1
      %s118 = scalar_select %p117, %s114, 1
      %s119 = smul.addr %s116, 2
      %s120 = sadd.s32 %s118, %s119
      %s121 = smul.addr %s120, 8
      %s122 = scalar_lea.vmem %s1, %s121
      %p123 = scmp.lt.s32.totalorder %s16, 1
      %s124 = scalar_select %p123, %s16, 1
      %s125 = smul.addr %s124, 8
      %s126 = scalar_lea.vmem %s0, %s125
      %s127 = smul.u32 2, %s17
      %p128 = scmp.lt.s32.totalorder %s16, 1
      %s129 = scalar_select %p128, %s16, 1
      %p130 = scmp.lt.s32.totalorder %s127, 1
      %s131 = scalar_select %p130, %s127, 1
      %s132 = smul.addr %s129, 2
      %s133 = sadd.s32 %s131, %s132
      %s134 = smul.addr %s133, 8
      %s135 = scalar_lea.vmem %s1, %s134
      %s136 = smul.u32 2, %s17
      %v137 = vld [vmem:[%s126] sm:$0xff]
      %138 = vst [vmem:[%s135] sm:$0xff] %v137
      %139 = vst [vmem:[%s135 + $0x8] sm:$0xff] %v137
      %s140 = smul.u32 2, %s17
      %p141 = scmp.lt.s32.totalorder %s16, 1
      %s142 = scalar_select %p141, %s16, 1
      %p143 = scmp.lt.s32.totalorder %s140, 1
      %s144 = scalar_select %p143, %s140, 1
      %s145 = smul.addr %s142, 2
      %s146 = sadd.s32 %s144, %s145
      %s147 = smul.addr %s146, 8
      %s148 = scalar_lea.vmem %s1, %s147
      // Predicated region
      $region25: #{aspp_pooling_forward.3} parent=23 // pred_check
        %p149 = pneg %p70
      $region26: #{aspp_pooling_forward.3} parent=23 // pred_check_branch
        %151 = sbr.rel (%p149) target = $region28
      $region27: #{aspp_pooling_forward.3} parent=23 // pred_region
        %s152 = smul.u32 2, %s17
      $region28: #{aspp_pooling_forward.3} parent=23 // pred_fallthru
        _
    $region24: #{aspp_pooling_forward.3} parent=5 // pred_fallthru
      _
    %p153 = scmp.le.s32.totalorder 2, %s7
    // Predicated region
    $region29: #{aspp_pooling_forward.3} parent=5 // pred_check
      %p154 = pneg %p153
    $region30: #{aspp_pooling_forward.3} parent=5 // pred_check_branch
      %156 = sbr.rel (%p154) target = $region32
    $region31: #{aspp_pooling_forward.3} parent=5 // pred_region
      %s157 = ssub.s32 %s7, 2
      // Predicated region
      $region33: #{aspp_pooling_forward.3} parent=31 // pred_check
        %p158 = pneg %p76
      $region34: #{aspp_pooling_forward.3} parent=31 // pred_check_branch
        %160 = sbr.rel (%p158) target = $region36
      $region35: #{aspp_pooling_forward.3} parent=31 // pred_region
        %s161 = smul.u32 2, %s19
        %p162 = scmp.lt.s32.totalorder %s18, 1
        %s163 = scalar_select %p162, %s18, 1
        %p164 = scmp.lt.s32.totalorder %s161, 1
        %s165 = scalar_select %p164, %s161, 1
        %s166 = smul.addr %s163, 2
        %s167 = sadd.s32 %s165, %s166
        %s168 = smul.addr %s167, 8
        %s169 = scalar_lea.vmem %s1, %s168
      $region36: #{aspp_pooling_forward.3} parent=31 // pred_fallthru
        _
    $region32: #{aspp_pooling_forward.3} parent=5 // pred_fallthru
      _
  $region6: #{aspp_pooling_forward.3} parent=0 // loop_footer
    %s11 = sadd.s32 1, %s7
  $region7: #{aspp_pooling_forward.3} parent=0 // loop_footer_branch
    %6 = sbr.rel target = $region3
  $region8: #{aspp_pooling_forward.3} parent=0 // loop_exit
    _

// kernel: aspp_pooling_forward.2
$region0: #{aspp_pooling_forward.2}
  #allocation0 [shape = 'u32[]', space=smem, size = 0x4, offset = 0x4, fixed_abs, tag = 'smem constant byte address 0x4 - core index']
  #allocation1 [shape = 'u32[144,128]{1,0:T(1,128)}', space=vmem, size = 0x12000, scoped, tag = 'internal scratch']
  %s0 = inlined_call_operand.vmem [shape: f32[2,4,256], index: 0, kind: input, shape index: {}]
  %s1 = inlined_call_operand.vmem [shape: f32[2,1,1,4], index: 1, kind: output, shape index: {}]
  %s2 = sld [smem:[#allocation0]]
  $region41: #{aspp_pooling_forward.2} parent=0
    _
  %s4 = ssub.s32 1, %s2
  %s5 = scalar_select 0, %s4, %s2
  loop: start=0, step=1, limit=4
  $region2: #{aspp_pooling_forward.2} parent=0 // loop_pre_header
    _
  $region3: #{aspp_pooling_forward.2} parent=0 // loop_header
    %s7 = sphi 0, %s11
    %p8 = scmp.ge.s32.totalorder %s7, 4
    %s14 = sphi 0, %s33
    %s15 = sphi 0, %s29
    %s16 = sphi 0, %s25
    %s17 = sphi 0, %s14
    %s18 = sphi 0, %s15
    %s19 = sphi 0, %s16
    %s20 = sphi 0, %s17
    %s21 = sphi 0, %s18
    %s22 = sphi 0, %s19
    %s44 = sphi 0, %s46
    %s47 = sphi 0, %s44
    %s48 = sphi 0, %s47
    %s64 = sphi 0, %s48
    %s72 = sphi 0, %s74
    %s75 = sphi 0, %s72
    %s76 = sphi 0, %s75
    %s92 = sphi 0, %s76
  $region4: #{aspp_pooling_forward.2} parent=0 // loop_header_branch
    %10 = sbr.rel (%p8) target = $region8
  $region5: #{aspp_pooling_forward.2} parent=0 // loop_body
    %s12 = ssub.s32 %s7, 1
    %s13 = ssub.s32 %s7, 2
    %s23 = sadd.s32 1, %s16
    %p24 = scmp.ge.s32.totalorder %s23, 1
    %s25 = scalar_select %p24, 0, %s23
    %s26 = sadd.s32 1, %s15
    %s27 = scalar_select %p24, %s26, %s15
    %p28 = scmp.ge.s32.totalorder %s27, 1
    %s29 = scalar_select %p28, 0, %s27
    %s30 = sadd.s32 1, %s14
    %s31 = scalar_select %p28, %s30, %s14
    %p32 = scmp.ge.s32.totalorder %s31, 2
    %s33 = scalar_select %p32, 0, %s31
    %s34 = sadd.s32 %s15, %s16
    %p35 = scmp.lt.s32.totalorder %s34, 0
    %s36 = scalar_select %p35, %s34, 0
    %s37 = sadd.s32 %s29, %s25
    %p38 = scmp.lt.s32.totalorder %s37, 0
    %s39 = scalar_select %p38, %s37, 0
    %s40 = ssub.s32 %s14, %s33
    %s41 = ssub.s32 %s36, %s39
    %s42 = sor.u32 %s40, %s41
    %p43 = scmp.eq.s32.totalorder %s42, 0
    %s45 = sadd.s32 %s44, 1
    %s46 = scalar_select %p43, %s44, %s45
    %p49 = pneg %p43
    %p50 = scmp.eq.s32.totalorder %s7, 1
    %p51 = por %p49, %p50
    %p52 = scmp.ne.s32.totalorder %s44, %s47
    %p53 = scmp.eq.s32.totalorder %s7, 0
    %p54 = por %p52, %p53
    %p55 = scmp.ne.s32.totalorder %s44, %s47
    %p56 = scmp.eq.s32.totalorder %s12, 1
    %p57 = por %p55, %p56
    %p58 = scmp.ne.s32.totalorder %s47, %s48
    %p59 = scmp.eq.s32.totalorder %s12, 0
    %p60 = por %p58, %p59
    %p61 = scmp.ne.s32.totalorder %s47, %s48
    %p62 = scmp.eq.s32.totalorder %s13, 1
    %p63 = por %p61, %p62
    %p65 = scmp.ne.s32.totalorder %s48, %s64
    %p66 = scmp.eq.s32.totalorder %s13, 0
    %p67 = por %p65, %p66
    %s68 = ssub.s32 %s14, %s33
    %s69 = ssub.s32 %s15, %s29
    %s70 = sor.u32 %s68, %s69
    %p71 = scmp.eq.s32.totalorder %s70, 0
    %s73 = sadd.s32 %s72, 1
    %s74 = scalar_select %p71, %s72, %s73
    %p77 = pneg %p71
    %p78 = scmp.eq.s32.totalorder %s7, 1
    %p79 = por %p77, %p78
    %p80 = scmp.ne.s32.totalorder %s72, %s75
    %p81 = scmp.eq.s32.totalorder %s7, 0
    %p82 = por %p80, %p81
    %p83 = scmp.ne.s32.totalorder %s72, %s75
    %p84 = scmp.eq.s32.totalorder %s12, 1
    %p85 = por %p83, %p84
    %p86 = scmp.ne.s32.totalorder %s75, %s76
    %p87 = scmp.eq.s32.totalorder %s12, 0
    %p88 = por %p86, %p87
    %p89 = scmp.ne.s32.totalorder %s75, %s76
    %p90 = scmp.eq.s32.totalorder %s13, 1
    %p91 = por %p89, %p90
    %p93 = scmp.ne.s32.totalorder %s76, %s92
    %p94 = scmp.eq.s32.totalorder %s13, 0
    %p95 = por %p93, %p94
    %p96 = scmp.le.s32.totalorder 1, %s7
    %p97 = scmp.lt.s32.totalorder %s7, 3
    %p98 = pnand %p96, %p97
    %p99 = pneg %p98
    // Predicated region
    $region9: #{aspp_pooling_forward.2} parent=5 // pred_check
      _
    $region10: #{aspp_pooling_forward.2} parent=5 // pred_check_branch
      %101 = sbr.rel (%p98) target = $region12
    $region11: #{aspp_pooling_forward.2} parent=5 // pred_region
      %s102 = ssub.s32 %s7, 1
    $region12: #{aspp_pooling_forward.2} parent=5 // pred_fallthru
      _
    %p103 = scmp.lt.s32.totalorder %s7, 2
    // Predicated region
    $region13: #{aspp_pooling_forward.2} parent=5 // pred_check
      %p104 = pneg %p103
    $region14: #{aspp_pooling_forward.2} parent=5 // pred_check_branch
      %106 = sbr.rel (%p104) target = $region16
    $region15: #{aspp_pooling_forward.2} parent=5 // pred_region
      // Predicated region
      $region17: #{aspp_pooling_forward.2} parent=15 // pred_check
        %p107 = pneg %p54
      $region18: #{aspp_pooling_forward.2} parent=15 // pred_check_branch
        %109 = sbr.rel (%p107) target = $region20
      $region19: #{aspp_pooling_forward.2} parent=15 // pred_region
        %s110 = sadd.s32 %s15, %s16
        %p111 = scmp.lt.s32.totalorder %s110, 0
        %s112 = scalar_select %p111, %s110, 0
        %s113 = smul.u32 2, %s112
        %p114 = scmp.lt.s32.totalorder %s14, 1
        %s115 = scalar_select %p114, %s14, 1
        %p116 = scmp.lt.s32.totalorder %s113, 1
        %s117 = scalar_select %p116, %s113, 1
        %s118 = smul.addr %s115, 2
        %s119 = sadd.s32 %s117, %s118
        %s120 = smul.addr %s119, 4
        %s121 = scalar_lea.vmem %s0, %s120
        %s122 = sadd.s32 %s15, %s16
        %p123 = scmp.lt.s32.totalorder %s122, 0
        %s124 = scalar_select %p123, %s122, 0
        %s125 = smul.u32 2, %s124
      $region20: #{aspp_pooling_forward.2} parent=15 // pred_fallthru
        _
    $region16: #{aspp_pooling_forward.2} parent=5 // pred_fallthru
      _
    %p126 = scmp.le.s32.totalorder 1, %s7
    %p127 = scmp.lt.s32.totalorder %s7, 3
    %p128 = pnand %p126, %p127
    %p129 = pneg %p128
    // Predicated region
    $region21: #{aspp_pooling_forward.2} parent=5 // pred_check
      _
    $region22: #{aspp_pooling_forward.2} parent=5 // pred_check_branch
      %131 = sbr.rel (%p128) target = $region24
    $region23: #{aspp_pooling_forward.2} parent=5 // pred_region
      %s132 = ssub.s32 %s7, 1
      %s133 = sadd.s32 %s18, %s19
      %p134 = scmp.lt.s32.totalorder %s133, 0
      %s135 = scalar_select %p134, %s133, 0
      %s136 = smul.u32 2, %s135
      %p137 = scmp.lt.s32.totalorder %s17, 1
      %s138 = scalar_select %p137, %s17, 1
      %p139 = scmp.lt.s32.totalorder %s136, 1
      %s140 = scalar_select %p139, %s136, 1
      %s141 = smul.addr %s138, 2
      %s142 = sadd.s32 %s140, %s141
      %s143 = smul.addr %s142, 4
      %s144 = scalar_lea.vmem %s0, %s143
      %p145 = pneg %p60
      %p146 = pneg %p57
      %p147 = pneg %p88
      %p148 = pneg %p85
      %p149 = scmp.lt.s32.totalorder %s17, 1
      %s150 = scalar_select %p149, %s17, 1
      %p151 = scmp.lt.s32.totalorder %s18, 0
      %s152 = scalar_select %p151, %s18, 0
      %s153 = sadd.s32 %s152, %s150
      %s154 = scalar_lea.vmem %s1, %s153
      %s155 = sadd.s32 %s18, %s19
      %p156 = scmp.lt.s32.totalorder %s155, 0
      %s157 = scalar_select %p156, %s155, 0
      %s158 = smul.u32 2, %s157
      %p159 = scmp.lt.s32.totalorder %s17, 1
      %s160 = scalar_select %p159, %s17, 1
      %p161 = scmp.lt.s32.totalorder %s158, 1
      %s162 = scalar_select %p161, %s158, 1
      %s163 = smul.addr %s160, 2
      %s164 = sadd.s32 %s162, %s163
      %s165 = smul.addr %s164, 4
      %s166 = scalar_lea.vmem %s0, %s165
      %s167 = sadd.s32 %s18, %s19
      %p168 = scmp.lt.s32.totalorder %s167, 0
      %s169 = scalar_select %p168, %s167, 0
      %s170 = smul.u32 2, %s169
      %p171 = scmp.lt.s32.totalorder %s17, 1
      %s172 = scalar_select %p171, %s17, 1
      %p173 = scmp.lt.s32.totalorder %s18, 0
      %s174 = scalar_select %p173, %s18, 0
      %s175 = sadd.s32 %s174, %s172
      %s176 = scalar_lea.vmem %s1, %s175
      %p177 = scmp.eq.s32.totalorder %s19, 0
      // Predicated region
      $region25: #{aspp_pooling_forward.2} parent=23 // pred_check
        %p178 = pneg %p177
      $region26: #{aspp_pooling_forward.2} parent=23 // pred_check_branch
        %180 = sbr.rel (%p178) target = $region28
      $region27: #{aspp_pooling_forward.2} parent=23 // pred_region
        %vm181 = vcmask 24576
        %182 = vst.msk [vmem:[%s176] sm:$0x1] %vm181, 0.0
      $region28: #{aspp_pooling_forward.2} parent=23 // pred_fallthru
        _
      %v183 = vld [vmem:[%s166] sm:$0xff]
      %v185 = vcombine.high %v183, %v183
      %vm187 = vcmask 1043456
      %v188 = vsel %vm187, %v183, 0.0
      %v189 = vsel %vm187, %v185, 0.0
      %v190 = vadd.f32 %v188, %v189
      %191 = vadd.xlane.f32.xlu0 %v190
      %v192 = vpop.xlane.xlu0 %191
      %v193 = vld [vmem:[%s176] sm:$0x1]
      %v195 = vlaneseq
      %v196 = vshrl.u32 %v195, 7
      %v197 = vsub.s32 0, %v196
      %v198 = vrot.slane %v192, %v197
      %v199 = vlaneseq
      %v200 = vshrl.u32 %v199, 7
      %v201 = vsub.s32 1, %v200
      %v202 = vrot.slane %v192, %v201
      %v203 = vlaneseq
      %v204 = vshrl.u32 %v203, 7
      %v205 = vsub.s32 2, %v204
      %v206 = vrot.slane %v192, %v205
      %v207 = vlaneseq
      %v208 = vshrl.u32 %v207, 7
      %v209 = vsub.s32 3, %v208
      %v210 = vrot.slane %v192, %v209
      %v211 = vcombine.low %v198, %v202
      %v212 = vcombine.low %v206, %v210
      %v214 = vunpack.c.l.s4 1966171168
      %v215 = vunpack.c.0.s8 %v214
      %v216 = vlaneseq
      %v217 = vshrl.u32 %v216, 7
      %v218 = vsub.s32 %v215, %v217
      %v219 = vrot.slane %v211, %v218
      %v221 = vunpack.c.l.s4 1966171168
      %v222 = vunpack.c.0.s8 %v221
      %v223 = vlaneseq
      %v224 = vshrl.u32 %v223, 7
      %v225 = vsub.s32 %v222, %v224
      %v226 = vrot.slane %v212, %v225
      %v227 = vcombine.low %v219, %v226
      %v229 = vunpack.c.l.s4 1966171168
      %v230 = vunpack.c.0.s8 %v229
      %v231 = vlaneseq
      %v232 = vshrl.u32 %v231, 7
      %v233 = vsub.s32 %v230, %v232
      %v234 = vrot.slane %v227, %v233
      %235 = vset.pattern.permute.xlu0 0
      %236 = vperm.xlu0 %235, %v234
      %v237 = vpop.permute.xlu0 %236
      %v238 = vlaneseq
      %v239 = vand.u32 %v238, 127
      %v240 = vlaneseq
      %v241 = vshrl.u32 %v240, 7
      %v242 = vsub.s32 %v239, %v241
      %v243 = vrot.slane %v237, %v242
      %v245 = vunpack.c.l.s4 1966171168
      %v246 = vunpack.c.0.s8 %v245
      %v247 = vlaneseq
      %v248 = vshrl.u32 %v247, 7
      %v249 = vsub.s32 %v246, %v248
      %v250 = vrot.slane %v243, %v249
      %v252 = vunpack.c.l.s4 1966171168
      %v253 = vunpack.c.0.s8 %v252
      %v254 = vlaneseq
      %v255 = vshrl.u32 %v254, 7
      %v256 = vsub.s32 %v253, %v255
      %v257 = vrot.slane %v250, %v256
      %v259 = vadd.f32 %v193, %v257
      %vm260 = vcmask 24576
      %261 = vst.msk [vmem:[%s176] sm:$0x1] %vm260, %v259
      %p262 = scmp.lt.s32.totalorder %s17, 1
      %s263 = scalar_select %p262, %s17, 1
      %p264 = scmp.lt.s32.totalorder %s18, 0
      %s265 = scalar_select %p264, %s18, 0
      %s266 = sadd.s32 %s265, %s263
      %s267 = scalar_lea.vmem %s1, %s266
      // Predicated region
      $region29: #{aspp_pooling_forward.2} parent=23 // pred_check
        %p268 = pneg %p85
      $region30: #{aspp_pooling_forward.2} parent=23 // pred_check_branch
        %270 = sbr.rel (%p268) target = $region32
      $region31: #{aspp_pooling_forward.2} parent=23 // pred_region
        _
      $region32: #{aspp_pooling_forward.2} parent=23 // pred_fallthru
        _
    $region24: #{aspp_pooling_forward.2} parent=5 // pred_fallthru
      _
    %p271 = scmp.le.s32.totalorder 2, %s7
    // Predicated region
    $region33: #{aspp_pooling_forward.2} parent=5 // pred_check
      %p272 = pneg %p271
    $region34: #{aspp_pooling_forward.2} parent=5 // pred_check_branch
      %274 = sbr.rel (%p272) target = $region36
    $region35: #{aspp_pooling_forward.2} parent=5 // pred_region
      %s275 = ssub.s32 %s7, 2
      // Predicated region
      $region37: #{aspp_pooling_forward.2} parent=35 // pred_check
        %p276 = pneg %p91
      $region38: #{aspp_pooling_forward.2} parent=35 // pred_check_branch
        %278 = sbr.rel (%p276) target = $region40
      $region39: #{aspp_pooling_forward.2} parent=35 // pred_region
        %p279 = scmp.lt.s32.totalorder %s20, 1
        %s280 = scalar_select %p279, %s20, 1
        %p281 = scmp.lt.s32.totalorder %s21, 0
        %s282 = scalar_select %p281, %s21, 0
        %s283 = sadd.s32 %s282, %s280
        %s284 = scalar_lea.vmem %s1, %s283
      $region40: #{aspp_pooling_forward.2} parent=35 // pred_fallthru
        _
    $region36: #{aspp_pooling_forward.2} parent=5 // pred_fallthru
      _
  $region6: #{aspp_pooling_forward.2} parent=0 // loop_footer
    %s11 = sadd.s32 1, %s7
  $region7: #{aspp_pooling_forward.2} parent=0 // loop_footer_branch
    %6 = sbr.rel target = $region3
  $region8: #{aspp_pooling_forward.2} parent=0 // loop_exit
    _

</llo_original>
